<compile_context>
chip_gen: v5e
topology: v5e:2x2
jax: 0.10.0
libtpu: 0.0.40
codegen_flags: <defaults>
</compile_context>

<pallas_src>
import jax
import jax.numpy as jnp
from jax import lax
from jax.experimental import pallas as pl
from jax.experimental.pallas import tpu as pltpu


def _round_up(x, m):
    return (x + m - 1) // m * m


def clf_head_kernel(ids_ref,      # [tB, S]  int32, VMEM
                    emb_ref,      # [Vp, Hp] bf16,  VMEM resident
                    w_pool_ref,   # [Hp, Hp] bf16,  VMEM resident
                    b_pool_ref,   # [1, Hp]  f32
                    w_clf_ref,    # [Hp, Cp] bf16
                    b_clf_ref,    # [1, Cp]  f32
                    logits_ref):  # [tB, Cp] f32 out (lane-dense: Cp multiple of 128)
    tB, S = ids_ref.shape
    Vp = emb_ref.shape[0]
    inv_s = 1.0 / S

    # Vectorized "gather": bag-of-tokens weights, 1/S folded in.
    ids = ids_ref[...]                                               # [tB, S] int32
    iota_v = lax.broadcasted_iota(jnp.int32, (tB, S, Vp), 2)         # lane iota
    onehot = jnp.where(iota_v == ids[:, :, None], inv_s, 0.0)        # [tB, S, Vp] f32
    bag = jnp.sum(onehot, axis=1).astype(jnp.bfloat16)               # [tB, Vp]

    # Mean-pooled embedding via a single MXU matmul (replaces the gather loop).
    mean_h = jnp.dot(bag, emb_ref[...],
                     preferred_element_type=jnp.float32)             # [tB, Hp] f32

    pooled = jnp.tanh(
        jnp.dot(mean_h.astype(jnp.bfloat16), w_pool_ref[...],
                preferred_element_type=jnp.float32) + b_pool_ref[...])  # [tB, Hp] f32

    logits = (jnp.dot(pooled.astype(jnp.bfloat16), w_clf_ref[...],
                      preferred_element_type=jnp.float32) + b_clf_ref[...])
    logits_ref[...] = logits.astype(logits_ref.dtype)


def inner_model(input_ids, params):
    """Synthetic inner span-clf model. Returns a tuple; element 0 is the logits.

    The pooled intermediate is intentionally not materialized or returned:
    ClfModel discards everything past model_output[0]."""
    B, S = input_ids.shape
    V, H = params["embedding"].shape
    C = params["w_clf"].shape[1]

    Vp = _round_up(V, 128)   # lane-dense vocab dim (one-hot matmul contraction)
    Hp = _round_up(H, 128)   # lane-dense hidden dim
    Cp = _round_up(C, 128)   # lane-dense logits dim (unmasked vst stores)

    # Layout plumbing only: zero-pad to lane width, cast matmul operands to bf16.
    emb_p = jnp.zeros((Vp, Hp), jnp.bfloat16).at[:V, :H].set(
        params["embedding"].astype(jnp.bfloat16))
    w_pool_p = jnp.zeros((Hp, Hp), jnp.bfloat16).at[:H, :H].set(
        params["w_pool"].astype(jnp.bfloat16))
    b_pool_p = jnp.zeros((1, Hp), jnp.float32).at[:, :H].set(
        params["b_pool"].astype(jnp.float32))
    w_clf_p = jnp.zeros((Hp, Cp), jnp.bfloat16).at[:H, :C].set(
        params["w_clf"].astype(jnp.bfloat16))
    b_clf_p = jnp.zeros((1, Cp), jnp.float32).at[:, :C].set(
        params["b_clf"].astype(jnp.float32))

    # Batch tiles form an independent ("parallel") grid axis.
    tB = B if B <= 8 else 8
    assert B % tB == 0, "toy wrapper requires B divisible by the batch tile"
    nB = B // tB

    # NOTE: for realistic vocabularies the (padded) embedding table would not fit
    # VMEM; it should then live in pl.ANY/HBM with per-tile DMA gather. At Vp=128
    # it is cheaper to keep it VMEM-resident (constant index_map -> DMA'd once).
    grid_spec = pltpu.PrefetchScalarGridSpec(
        num_scalar_prefetch=0,
        grid=(nB,),
        in_specs=[
            pl.BlockSpec((tB, S), lambda i: (i, 0)),      # input_ids tile
            pl.BlockSpec((Vp, Hp), lambda i: (0, 0)),     # embedding (resident)
            pl.BlockSpec((Hp, Hp), lambda i: (0, 0)),     # w_pool    (resident)
            pl.BlockSpec((1, Hp), lambda i: (0, 0)),      # b_pool
            pl.BlockSpec((Hp, Cp), lambda i: (0, 0)),     # w_clf
            pl.BlockSpec((1, Cp), lambda i: (0, 0)),      # b_clf
        ],
        out_specs=pl.BlockSpec((tB, Cp), lambda i: (i, 0)),
    )

    logits_padded = pl.pallas_call(
        clf_head_kernel,
        out_shape=jax.ShapeDtypeStruct((B, Cp), jnp.float32),
        grid_spec=grid_spec,
        compiler_params=pltpu.CompilerParams(
            dimension_semantics=("parallel",)),
    )(input_ids.astype(jnp.int32), emb_p, w_pool_p, b_pool_p, w_clf_p, b_clf_p)

    logits = logits_padded[:, :C]
    return (logits,)


def clf_model_forward(params, **kwargs):
    """ClfModel.forward: call the inner model with **kwargs, return model_output[0]."""
    model_output = inner_model(kwargs["input_ids"], params)
    return model_output[0]


def init_params(key, vocab=64, hidden=32, num_classes=4):
    k0, k1, k2, k3, k4 = jax.random.split(key, 5)
    scale = 0.02
    return {
        "embedding": scale * jax.random.normal(k0, (vocab, hidden), jnp.float32),
        "w_pool":    scale * jax.random.normal(k1, (hidden, hidden), jnp.float32),
        "b_pool":    scale * jax.random.normal(k2, (1, hidden), jnp.float32),
        "w_clf":     scale * jax.random.normal(k3, (hidden, num_classes), jnp.float32),
        "b_clf":     scale * jax.random.normal(k4, (1, num_classes), jnp.float32),
    }


if __name__ == "__main__":
    key = jax.random.PRNGKey(0)
    pkey, dkey = jax.random.split(key)

    B, S, V, H, C = 16, 8, 64, 32, 4
    params = init_params(pkey, vocab=V, hidden=H, num_classes=C)
    input_ids = jax.random.randint(dkey, (B, S), 0, V, dtype=jnp.int32)

    logits = clf_model_forward(params, input_ids=input_ids)
    logits = jax.block_until_ready(logits)

    # Pure-JAX reference (same bf16-rounded matmul operands as the kernel).
    def bf(x):
        return x.astype(jnp.bfloat16).astype(jnp.float32)

    hidden = bf(params["embedding"])[input_ids]                 # [B, S, H]
    mean_h = jnp.sum(hidden, axis=1) * (1.0 / S)                # [B, H]
    pooled = jnp.tanh(bf(mean_h) @ bf(params["w_pool"]) + params["b_pool"])
    logits_ref = bf(pooled) @ bf(params["w_clf"]) + params["b_clf"]

    assert logits.shape == (B, C)
    assert jnp.allclose(logits, logits_ref, atol=5e-3), "mismatch vs reference"

    print("KERNEL_OK")
</pallas_src>

<mosaic_0001>
module attributes {stable_mosaic.version = 11 : i64} {
  func.func @clf_head_kernel(%arg0: i32, %arg1: memref<8x8xi32, #tpu.memory_space<vmem>>, %arg2: memref<128x128xbf16, #tpu.memory_space<vmem>>, %arg3: memref<128x128xbf16, #tpu.memory_space<vmem>>, %arg4: memref<1x128xf32, #tpu.memory_space<vmem>>, %arg5: memref<128x128xbf16, #tpu.memory_space<vmem>>, %arg6: memref<1x128xf32, #tpu.memory_space<vmem>>, %arg7: memref<8x128xf32, #tpu.memory_space<vmem>>) attributes {dimension_semantics = [#tpu.dimension_semantics<parallel>], iteration_bounds = array<i64: 2>, scalar_prefetch = 0 : i64, scratch_operands = 0 : i64, tpu.core_type = #tpu.core_type<tc>, window_params = [{transform_indices = @transform_0, window_bounds = array<i64: 8, 8>}, {pipeline_mode = #tpu.pipeline_mode<synchronous>, transform_indices = @transform_1, window_bounds = array<i64: 128, 128>}, {pipeline_mode = #tpu.pipeline_mode<synchronous>, transform_indices = @transform_2, window_bounds = array<i64: 128, 128>}, {pipeline_mode = #tpu.pipeline_mode<synchronous>, transform_indices = @transform_3, window_bounds = array<i64: 1, 128>}, {pipeline_mode = #tpu.pipeline_mode<synchronous>, transform_indices = @transform_4, window_bounds = array<i64: 128, 128>}, {pipeline_mode = #tpu.pipeline_mode<synchronous>, transform_indices = @transform_5, window_bounds = array<i64: 1, 128>}, {transform_indices = @transform_6, window_bounds = array<i64: 8, 128>}]} {
    %c0 = arith.constant 0 : index
    %c0_0 = arith.constant 0 : index
    %0 = vector.load %arg1[%c0, %c0_0] : memref<8x8xi32, #tpu.memory_space<vmem>>, vector<8x8xi32>
    %1 = tpu.iota {dimensions = array<i32: 2>} : vector<8x8x128xi32>
    %2 = vector.shape_cast %0 : vector<8x8xi32> to vector<8x8x1xi32>
    %3 = vector.broadcast %2 : vector<8x8x1xi32> to vector<8x8x128xi32>
    %4 = arith.cmpi eq, %1, %3 : vector<8x8x128xi32>
    %cst = arith.constant 1.250000e-01 : f32
    %cst_1 = arith.constant 0.000000e+00 : f32
    %5 = vector.broadcast %cst : f32 to vector<8x8x128xf32>
    %6 = vector.broadcast %cst_1 : f32 to vector<8x8x128xf32>
    %7 = arith.select %4, %5, %6 : vector<8x8x128xi1>, vector<8x8x128xf32>
    %cst_2 = arith.constant dense<0.000000e+00> : vector<8x128xf32>
    %8 = vector.multi_reduction <add>, %7, %cst_2 [1] : vector<8x8x128xf32> to vector<8x128xf32>
    %9 = arith.truncf %8 : vector<8x128xf32> to vector<8x128xbf16>
    %c0_3 = arith.constant 0 : index
    %c0_4 = arith.constant 0 : index
    %10 = vector.load %arg2[%c0_3, %c0_4] : memref<128x128xbf16, #tpu.memory_space<vmem>>, vector<128x128xbf16>
    %cst_5 = arith.constant dense<0.000000e+00> : vector<8x128xf32>
    %11 = tpu.matmul %9, %10, %cst_5 {dimension_numbers = #tpu.dot_dimension_numbers<[1], [0], [0], [1], [0, 0, 1, 1], [], []>} : vector<8x128xbf16>, vector<128x128xbf16>, vector<8x128xf32> -> vector<8x128xf32>
    %12 = arith.truncf %11 : vector<8x128xf32> to vector<8x128xbf16>
    %c0_6 = arith.constant 0 : index
    %c0_7 = arith.constant 0 : index
    %13 = vector.load %arg3[%c0_6, %c0_7] : memref<128x128xbf16, #tpu.memory_space<vmem>>, vector<128x128xbf16>
    %cst_8 = arith.constant dense<0.000000e+00> : vector<8x128xf32>
    %14 = tpu.matmul %12, %13, %cst_8 {dimension_numbers = #tpu.dot_dimension_numbers<[1], [0], [0], [1], [0, 0, 1, 1], [], []>} : vector<8x128xbf16>, vector<128x128xbf16>, vector<8x128xf32> -> vector<8x128xf32>
    %c0_9 = arith.constant 0 : index
    %c0_10 = arith.constant 0 : index
    %15 = vector.load %arg4[%c0_9, %c0_10] : memref<1x128xf32, #tpu.memory_space<vmem>>, vector<1x128xf32>
    %16 = vector.broadcast %15 : vector<1x128xf32> to vector<8x128xf32>
    %17 = arith.addf %14, %16 : vector<8x128xf32>
    %18 = math.tanh %17 : vector<8x128xf32>
    %19 = arith.truncf %18 : vector<8x128xf32> to vector<8x128xbf16>
    %c0_11 = arith.constant 0 : index
    %c0_12 = arith.constant 0 : index
    %20 = vector.load %arg5[%c0_11, %c0_12] : memref<128x128xbf16, #tpu.memory_space<vmem>>, vector<128x128xbf16>
    %cst_13 = arith.constant dense<0.000000e+00> : vector<8x128xf32>
    %21 = tpu.matmul %19, %20, %cst_13 {dimension_numbers = #tpu.dot_dimension_numbers<[1], [0], [0], [1], [0, 0, 1, 1], [], []>} : vector<8x128xbf16>, vector<128x128xbf16>, vector<8x128xf32> -> vector<8x128xf32>
    %c0_14 = arith.constant 0 : index
    %c0_15 = arith.constant 0 : index
    %22 = vector.load %arg6[%c0_14, %c0_15] : memref<1x128xf32, #tpu.memory_space<vmem>>, vector<1x128xf32>
    %23 = vector.broadcast %22 : vector<1x128xf32> to vector<8x128xf32>
    %24 = arith.addf %21, %23 : vector<8x128xf32>
    %c0_16 = arith.constant 0 : index
    %c0_17 = arith.constant 0 : index
    %25 = vector.load %arg7[%c0_16, %c0_17] : memref<8x128xf32, #tpu.memory_space<vmem>>, vector<8x128xf32>
    tpu.vector_store %arg7[%c0_16, %c0_17], %24 {strides = array<i32>} : memref<8x128xf32, #tpu.memory_space<vmem>>, vector<8x128xf32>,
    return
  }
  func.func @transform_0(%arg0: i32) -> (i32, i32) {
    %c0_i32 = arith.constant 0 : i32
    %c0_i32_0 = arith.constant 0 : i32
    return %arg0, %c0_i32 : i32, i32
  }
  func.func @transform_1(%arg0: i32) -> (i32, i32) {
    %c0_i32 = arith.constant 0 : i32
    %c0_i32_0 = arith.constant 0 : i32
    %c0_i32_1 = arith.constant 0 : i32
    return %c0_i32, %c0_i32_0 : i32, i32
  }
  func.func @transform_2(%arg0: i32) -> (i32, i32) {
    %c0_i32 = arith.constant 0 : i32
    %c0_i32_0 = arith.constant 0 : i32
    %c0_i32_1 = arith.constant 0 : i32
    return %c0_i32, %c0_i32_0 : i32, i32
  }
  func.func @transform_3(%arg0: i32) -> (i32, i32) {
    %c0_i32 = arith.constant 0 : i32
    %c0_i32_0 = arith.constant 0 : i32
    %c0_i32_1 = arith.constant 0 : i32
    return %c0_i32, %c0_i32_0 : i32, i32
  }
  func.func @transform_4(%arg0: i32) -> (i32, i32) {
    %c0_i32 = arith.constant 0 : i32
    %c0_i32_0 = arith.constant 0 : i32
    %c0_i32_1 = arith.constant 0 : i32
    return %c0_i32, %c0_i32_0 : i32, i32
  }
  func.func @transform_5(%arg0: i32) -> (i32, i32) {
    %c0_i32 = arith.constant 0 : i32
    %c0_i32_0 = arith.constant 0 : i32
    %c0_i32_1 = arith.constant 0 : i32
    return %c0_i32, %c0_i32_0 : i32, i32
  }
  func.func @transform_6(%arg0: i32) -> (i32, i32) {
    %c0_i32 = arith.constant 0 : i32
    %c0_i32_0 = arith.constant 0 : i32
    return %arg0, %c0_i32 : i32, i32
  }
}

</mosaic_0001>

<llo_original>
// kernel: tpu_custom_call.1
$region0: #{tpu_custom_call.1}
  #allocation0 [shape = 'u32[]', space=smem, size = 0x4, offset = 0x4, fixed_abs, tag = 'smem constant byte address 0x4 - core index']
  #allocation1 [shape = 'u32[72,128]{1,0:T(1,128)}', space=vmem, size = 0x9000, scoped, tag = 'internal scratch']
  %s0 = inlined_call_operand.vmem [shape: s32[16,8], index: 0, kind: input, shape index: {}]
  %s1 = inlined_call_operand.hbm [shape: bf16[128,128], index: 1, kind: input, shape index: {}]
  %s2 = inlined_call_operand.hbm [shape: bf16[128,128], index: 2, kind: input, shape index: {}]
  %s3 = inlined_call_operand.vmem [shape: f32[1,128], index: 3, kind: input, shape index: {}]
  %s4 = inlined_call_operand.hbm [shape: bf16[128,128], index: 4, kind: input, shape index: {}]
  %s5 = inlined_call_operand.vmem [shape: f32[1,128], index: 5, kind: input, shape index: {}]
  %s6 = inlined_call_operand.hbm [shape: f32[16,128], index: 6, kind: output, shape index: {}]
  %s7 = sld [smem:[#allocation0]]
  $region69: #{tpu_custom_call.1} parent=0
    _
  %s9 = ssub.s32 1, %s7
  %s10 = scalar_select 0, %s9, %s7
  $region1: #{tpu_custom_call.1} parent=0
    #allocation2 [shape = 'u8[32768]{0}', space=vmem, size = 0x8000, scoped, tag = 'input window, operand 1, single buffered']
    #allocation3 [shape = 's32[2]{0}', space=sflag, size = 0x8, scoped, tag = 'scoped memory for tpu_custom_call.1']
    #allocation4 [shape = 's32[2]{0}', space=sflag, size = 0x8, scoped, tag = 'scoped memory for tpu_custom_call.1']
    #allocation5 [shape = 'u8[32768]{0}', space=vmem, size = 0x8000, scoped, tag = 'input window, operand 2, single buffered']
    #allocation6 [shape = 's32[1]{0}', space=sflag, size = 0x4, scoped, tag = 'scoped memory for tpu_custom_call.1']
    #allocation7 [shape = 'u8[32768]{0}', space=vmem, size = 0x8000, scoped, tag = 'input window, operand 4, single buffered']
    #allocation8 [shape = 'u8[8192]{0}', space=vmem, size = 0x2000, scoped, tag = 'output window, operand 0']
    %11 = vsyncpa [#allocation3], 0
    %12 = vsyncpa [#allocation6], 0
    %13 = vsyncpa [#allocation4], 0
    %s14 = scalar_lea.sflag [#allocation4], 1
    %15 = vsyncpa %s14, 0
    loop: start=0, step=1, limit=4
    $region2: #{tpu_custom_call.1} parent=1 // loop_pre_header
      _
    $region3: #{tpu_custom_call.1} parent=1 // loop_header
      %s17 = sphi 0, %s21
      %p18 = scmp.ge.s32.totalorder %s17, 4
      %s27 = sphi 0, %s29
      %s30 = sphi 0, %s27
      %s31 = sphi 0, %s30
      %s47 = sphi 0, %s31
      %s51 = sphi 0, %s51
      %s53 = sphi 0, %s51
      %s54 = sphi 0, %s53
      %s68 = sphi 0, %s54
      %s72 = sphi 0, %s72
      %s74 = sphi 0, %s72
      %s75 = sphi 0, %s74
      %s89 = sphi 0, %s75
      %s93 = sphi 0, %s93
      %s95 = sphi 0, %s93
      %s96 = sphi 0, %s95
      %s110 = sphi 0, %s96
      %s114 = sphi 0, %s114
      %s116 = sphi 0, %s114
      %s117 = sphi 0, %s116
      %s131 = sphi 0, %s117
      %s135 = sphi 0, %s135
      %s137 = sphi 0, %s135
      %s138 = sphi 0, %s137
      %s152 = sphi 0, %s138
      %s158 = sphi 0, %s160
      %s161 = sphi 0, %s158
      %s162 = sphi 0, %s161
      %s178 = sphi 0, %s162
    $region4: #{tpu_custom_call.1} parent=1 // loop_header_branch
      %20 = sbr.rel (%p18) target = $region8
    $region5: #{tpu_custom_call.1} parent=1 // loop_body
      %s22 = ssub.s32 %s17, 1
      %s23 = ssub.s32 %s17, 2
      %s24 = sadd.s32 %s17, 1
      %s25 = ssub.s32 %s17, %s24
      %p26 = scmp.eq.s32.totalorder %s25, 0
      %s28 = sadd.s32 %s27, 1
      %s29 = scalar_select %p26, %s27, %s28
      %p32 = pneg %p26
      %p33 = scmp.eq.s32.totalorder %s17, 1
      %p34 = por %p32, %p33
      %p35 = scmp.ne.s32.totalorder %s27, %s30
      %p36 = scmp.eq.s32.totalorder %s17, 0
      %p37 = por %p35, %p36
      %p38 = scmp.ne.s32.totalorder %s27, %s30
      %p39 = scmp.eq.s32.totalorder %s22, 1
      %p40 = por %p38, %p39
      %p41 = scmp.ne.s32.totalorder %s30, %s31
      %p42 = scmp.eq.s32.totalorder %s22, 0
      %p43 = por %p41, %p42
      %p44 = scmp.ne.s32.totalorder %s30, %s31
      %p45 = scmp.eq.s32.totalorder %s23, 1
      %p46 = por %p44, %p45
      %p48 = scmp.ne.s32.totalorder %s31, %s47
      %p49 = scmp.eq.s32.totalorder %s23, 0
      %p50 = por %p48, %p49
      %s52 = sadd.s32 %s51, 1
      %p55 = scmp.eq.s32.totalorder %s17, 1
      %p56 = scmp.ne.s32.totalorder %s51, %s53
      %p57 = scmp.eq.s32.totalorder %s17, 0
      %p58 = por %p56, %p57
      %p59 = scmp.ne.s32.totalorder %s51, %s53
      %p60 = scmp.eq.s32.totalorder %s22, 1
      %p61 = por %p59, %p60
      %p62 = scmp.ne.s32.totalorder %s53, %s54
      %p63 = scmp.eq.s32.totalorder %s22, 0
      %p64 = por %p62, %p63
      %p65 = scmp.ne.s32.totalorder %s53, %s54
      %p66 = scmp.eq.s32.totalorder %s23, 1
      %p67 = por %p65, %p66
      %p69 = scmp.ne.s32.totalorder %s54, %s68
      %p70 = scmp.eq.s32.totalorder %s23, 0
      %p71 = por %p69, %p70
      %s73 = sadd.s32 %s72, 1
      %p76 = scmp.eq.s32.totalorder %s17, 1
      %p77 = scmp.ne.s32.totalorder %s72, %s74
      %p78 = scmp.eq.s32.totalorder %s17, 0
      %p79 = por %p77, %p78
      %p80 = scmp.ne.s32.totalorder %s72, %s74
      %p81 = scmp.eq.s32.totalorder %s22, 1
      %p82 = por %p80, %p81
      %p83 = scmp.ne.s32.totalorder %s74, %s75
      %p84 = scmp.eq.s32.totalorder %s22, 0
      %p85 = por %p83, %p84
      %p86 = scmp.ne.s32.totalorder %s74, %s75
      %p87 = scmp.eq.s32.totalorder %s23, 1
      %p88 = por %p86, %p87
      %p90 = scmp.ne.s32.totalorder %s75, %s89
      %p91 = scmp.eq.s32.totalorder %s23, 0
      %p92 = por %p90, %p91
      %s94 = sadd.s32 %s93, 1
      %p97 = scmp.eq.s32.totalorder %s17, 1
      %p98 = scmp.ne.s32.totalorder %s93, %s95
      %p99 = scmp.eq.s32.totalorder %s17, 0
      %p100 = por %p98, %p99
      %p101 = scmp.ne.s32.totalorder %s93, %s95
      %p102 = scmp.eq.s32.totalorder %s22, 1
      %p103 = por %p101, %p102
      %p104 = scmp.ne.s32.totalorder %s95, %s96
      %p105 = scmp.eq.s32.totalorder %s22, 0
      %p106 = por %p104, %p105
      %p107 = scmp.ne.s32.totalorder %s95, %s96
      %p108 = scmp.eq.s32.totalorder %s23, 1
      %p109 = por %p107, %p108
      %p111 = scmp.ne.s32.totalorder %s96, %s110
      %p112 = scmp.eq.s32.totalorder %s23, 0
      %p113 = por %p111, %p112
      %s115 = sadd.s32 %s114, 1
      %p118 = scmp.eq.s32.totalorder %s17, 1
      %p119 = scmp.ne.s32.totalorder %s114, %s116
      %p120 = scmp.eq.s32.totalorder %s17, 0
      %p121 = por %p119, %p120
      %p122 = scmp.ne.s32.totalorder %s114, %s116
      %p123 = scmp.eq.s32.totalorder %s22, 1
      %p124 = por %p122, %p123
      %p125 = scmp.ne.s32.totalorder %s116, %s117
      %p126 = scmp.eq.s32.totalorder %s22, 0
      %p127 = por %p125, %p126
      %p128 = scmp.ne.s32.totalorder %s116, %s117
      %p129 = scmp.eq.s32.totalorder %s23, 1
      %p130 = por %p128, %p129
      %p132 = scmp.ne.s32.totalorder %s117, %s131
      %p133 = scmp.eq.s32.totalorder %s23, 0
      %p134 = por %p132, %p133
      %s136 = sadd.s32 %s135, 1
      %p139 = scmp.eq.s32.totalorder %s17, 1
      %p140 = scmp.ne.s32.totalorder %s135, %s137
      %p141 = scmp.eq.s32.totalorder %s17, 0
      %p142 = por %p140, %p141
      %p143 = scmp.ne.s32.totalorder %s135, %s137
      %p144 = scmp.eq.s32.totalorder %s22, 1
      %p145 = por %p143, %p144
      %p146 = scmp.ne.s32.totalorder %s137, %s138
      %p147 = scmp.eq.s32.totalorder %s22, 0
      %p148 = por %p146, %p147
      %p149 = scmp.ne.s32.totalorder %s137, %s138
      %p150 = scmp.eq.s32.totalorder %s23, 1
      %p151 = por %p149, %p150
      %p153 = scmp.ne.s32.totalorder %s138, %s152
      %p154 = scmp.eq.s32.totalorder %s23, 0
      %p155 = por %p153, %p154
      %s156 = ssub.s32 %s17, %s24
      %p157 = scmp.eq.s32.totalorder %s156, 0
      %s159 = sadd.s32 %s158, 1
      %s160 = scalar_select %p157, %s158, %s159
      %p163 = pneg %p157
      %p164 = scmp.eq.s32.totalorder %s17, 1
      %p165 = por %p163, %p164
      %p166 = scmp.ne.s32.totalorder %s158, %s161
      %p167 = scmp.eq.s32.totalorder %s17, 0
      %p168 = por %p166, %p167
      %p169 = scmp.ne.s32.totalorder %s158, %s161
      %p170 = scmp.eq.s32.totalorder %s22, 1
      %p171 = por %p169, %p170
      %p172 = scmp.ne.s32.totalorder %s161, %s162
      %p173 = scmp.eq.s32.totalorder %s22, 0
      %p174 = por %p172, %p173
      %p175 = scmp.ne.s32.totalorder %s161, %s162
      %p176 = scmp.eq.s32.totalorder %s23, 1
      %p177 = por %p175, %p176
      %p179 = scmp.ne.s32.totalorder %s162, %s178
      %p180 = scmp.eq.s32.totalorder %s23, 0
      %p181 = por %p179, %p180
      %p182 = scmp.le.s32.totalorder 1, %s17
      %p183 = scmp.lt.s32.totalorder %s17, 3
      %p184 = pnand %p182, %p183
      %p185 = pneg %p184
      // Predicated region
      $region9: #{tpu_custom_call.1} parent=5 // pred_check
        _
      $region10: #{tpu_custom_call.1} parent=5 // pred_check_branch
        %187 = sbr.rel (%p184) target = $region12
      $region11: #{tpu_custom_call.1} parent=5 // pred_region
        %s188 = ssub.s32 %s17, 1
        // Predicated region
        $region13: #{tpu_custom_call.1} parent=11 // pred_check
          %p189 = pneg %p64
        $region14: #{tpu_custom_call.1} parent=11 // pred_check_branch
          %191 = sbr.rel (%p189) target = $region16
        $region15: #{tpu_custom_call.1} parent=11 // pred_region
          %193 = vsyncadd [#allocation3], 0
          %s194 = sshll.u32 %s1, 4
          %s195 = int_to_ptr.hbm [resolvable:$true] %s194
          %s196 = sshll.u32 [#allocation2], 4
          %s197 = int_to_ptr.vmem [resolvable:$true] %s196
          %202 = dma.hbm_to_vmem [thread:$0]  %s195, 1024, %s197, [#allocation3], 64, 64, 4
        $region16: #{tpu_custom_call.1} parent=11 // pred_fallthru
          _
        // Predicated region
        $region17: #{tpu_custom_call.1} parent=11 // pred_check
          %p203 = pneg %p85
        $region18: #{tpu_custom_call.1} parent=11 // pred_check_branch
          %205 = sbr.rel (%p203) target = $region20
        $region19: #{tpu_custom_call.1} parent=11 // pred_region
          %207 = vsyncadd [#allocation6], 0
          %s208 = sshll.u32 %s2, 4
          %s209 = int_to_ptr.hbm [resolvable:$true] %s208
          %s210 = sshll.u32 [#allocation5], 4
          %s211 = int_to_ptr.vmem [resolvable:$true] %s210
          %216 = dma.hbm_to_vmem [thread:$0]  %s209, 1024, %s211, [#allocation6], 64, 64, 4
        $region20: #{tpu_custom_call.1} parent=11 // pred_fallthru
          _
        // Predicated region
        $region21: #{tpu_custom_call.1} parent=11 // pred_check
          %p217 = pneg %p106
        $region22: #{tpu_custom_call.1} parent=11 // pred_check_branch
          %219 = sbr.rel (%p217) target = $region24
        $region23: #{tpu_custom_call.1} parent=11 // pred_region
          _
        $region24: #{tpu_custom_call.1} parent=11 // pred_fallthru
          _
        // Predicated region
        $region25: #{tpu_custom_call.1} parent=11 // pred_check
          %p220 = pneg %p127
        $region26: #{tpu_custom_call.1} parent=11 // pred_check_branch
          %222 = sbr.rel (%p220) target = $region28
        $region27: #{tpu_custom_call.1} parent=11 // pred_region
          %224 = vsyncadd [#allocation6], 0
          %s225 = sshll.u32 %s4, 4
          %s226 = int_to_ptr.hbm [resolvable:$true] %s225
          %s227 = sshll.u32 [#allocation7], 4
          %s228 = int_to_ptr.vmem [resolvable:$true] %s227
          %233 = dma.hbm_to_vmem [thread:$0]  %s226, 1024, %s228, [#allocation6], 64, 64, 4
        $region28: #{tpu_custom_call.1} parent=11 // pred_fallthru
          _
        // Predicated region
        $region29: #{tpu_custom_call.1} parent=11 // pred_check
          %p234 = pneg %p148
        $region30: #{tpu_custom_call.1} parent=11 // pred_check_branch
          %236 = sbr.rel (%p234) target = $region32
        $region31: #{tpu_custom_call.1} parent=11 // pred_region
          _
        $region32: #{tpu_custom_call.1} parent=11 // pred_fallthru
          _
      $region12: #{tpu_custom_call.1} parent=5 // pred_fallthru
        _
      %p237 = scmp.lt.s32.totalorder %s17, 2
      // Predicated region
      $region33: #{tpu_custom_call.1} parent=5 // pred_check
        %p238 = pneg %p237
      $region34: #{tpu_custom_call.1} parent=5 // pred_check_branch
        %240 = sbr.rel (%p238) target = $region36
      $region35: #{tpu_custom_call.1} parent=5 // pred_region
        // Predicated region
        $region37: #{tpu_custom_call.1} parent=35 // pred_check
          %p241 = pneg %p37
        $region38: #{tpu_custom_call.1} parent=35 // pred_check_branch
          %243 = sbr.rel (%p241) target = $region40
        $region39: #{tpu_custom_call.1} parent=35 // pred_region
          %p244 = scmp.lt.s32.totalorder %s17, 1
          %s245 = scalar_select %p244, %s17, 1
          %s246 = smul.addr %s245, 8
          %s247 = scalar_lea.vmem %s0, %s246
        $region40: #{tpu_custom_call.1} parent=35 // pred_fallthru
          _
      $region36: #{tpu_custom_call.1} parent=5 // pred_fallthru
        _
      %p248 = scmp.le.s32.totalorder 1, %s17
      %p249 = scmp.lt.s32.totalorder %s17, 3
      %p250 = pnand %p248, %p249
      %p251 = pneg %p250
      // Predicated region
      $region41: #{tpu_custom_call.1} parent=5 // pred_check
        _
      $region42: #{tpu_custom_call.1} parent=5 // pred_check_branch
        %253 = sbr.rel (%p250) target = $region44
      $region43: #{tpu_custom_call.1} parent=5 // pred_region
        %s254 = ssub.s32 %s17, 1
        // Predicated region
        $region45: #{tpu_custom_call.1} parent=43 // pred_check
          %p255 = pneg %p64
        $region46: #{tpu_custom_call.1} parent=43 // pred_check_branch
          %257 = sbr.rel (%p255) target = $region48
        $region47: #{tpu_custom_call.1} parent=43 // pred_region
          %259 = dma.done [#allocation3], 1024
        $region48: #{tpu_custom_call.1} parent=43 // pred_fallthru
          _
        // Predicated region
        $region49: #{tpu_custom_call.1} parent=43 // pred_check
          %p260 = pneg %p85
        $region50: #{tpu_custom_call.1} parent=43 // pred_check_branch
          %262 = sbr.rel (%p260) target = $region52
        $region51: #{tpu_custom_call.1} parent=43 // pred_region
          %264 = dma.done [#allocation6], 1024
        $region52: #{tpu_custom_call.1} parent=43 // pred_fallthru
          _
        // Predicated region
        $region53: #{tpu_custom_call.1} parent=43 // pred_check
          %p265 = pneg %p127
        $region54: #{tpu_custom_call.1} parent=43 // pred_check_branch
          %267 = sbr.rel (%p265) target = $region56
        $region55: #{tpu_custom_call.1} parent=43 // pred_region
          %269 = dma.done [#allocation6], 1024
        $region56: #{tpu_custom_call.1} parent=43 // pred_fallthru
          _
        %p270 = scmp.lt.s32.totalorder %s22, 1
        %s271 = scalar_select %p270, %s22, 1
        %s272 = smul.addr %s271, 8
        %s273 = scalar_lea.vmem %s0, %s272
        %p274 = pneg %p43
        %p275 = pneg %p40
        %p276 = pneg %p64
        %p277 = pneg %p61
        %p278 = pneg %p85
        %p279 = pneg %p82
        %p280 = pneg %p106
        %p281 = pneg %p103
        %p282 = pneg %p127
        %p283 = pneg %p124
        %p284 = pneg %p148
        %p285 = pneg %p145
        %p286 = pneg %p174
        %p287 = pneg %p171
        %s288 = sand.u32 %s161, 1
        %s289 = scalar_lea.sflag [#allocation4], %s288
        %s290 = sand.u32 %s161, 1
        %s291 = smul.addr %s290, 8
        %s292 = scalar_lea.vmem [#allocation8], %s291
        %p293 = scmp.lt.s32.totalorder %s22, 1
        %s294 = scalar_select %p293, %s22, 1
        %s295 = smul.addr %s294, 8
        %s296 = scalar_lea.vmem %s0, %s295
        %v297 = vld [vmem:[%s296] sm:$0xff]
        %v298 = vlaneseq
        %v299 = vand.u32 %v298, 127
        %v300 = vperm.slane %v297, 0
        %v301 = vlaneseq
        %v302 = vshrl.u32 %v301, 7
        %304 = vset.pattern.permute.xlu0 %v302
        %305 = vperm.xlu0 %304, %v300
        %v306 = vpop.permute.xlu0 %305
        %v307 = vperm.slane %v297, 1
        %v308 = vlaneseq
        %v309 = vshrl.u32 %v308, 7
        %311 = vset.pattern.permute.xlu0 %v309
        %312 = vperm.xlu0 %311, %v307
        %v313 = vpop.permute.xlu0 %312
        %v314 = vperm.slane %v297, 2
        %v315 = vlaneseq
        %v316 = vshrl.u32 %v315, 7
        %318 = vset.pattern.permute.xlu0 %v316
        %319 = vperm.xlu0 %318, %v314
        %v320 = vpop.permute.xlu0 %319
        %v321 = vperm.slane %v297, 3
        %v322 = vlaneseq
        %v323 = vshrl.u32 %v322, 7
        %325 = vset.pattern.permute.xlu0 %v323
        %326 = vperm.xlu0 %325, %v321
        %v327 = vpop.permute.xlu0 %326
        %v328 = vperm.slane %v297, 4
        %v329 = vlaneseq
        %v330 = vshrl.u32 %v329, 7
        %332 = vset.pattern.permute.xlu0 %v330
        %333 = vperm.xlu0 %332, %v328
        %v334 = vpop.permute.xlu0 %333
        %v335 = vperm.slane %v297, 5
        %v336 = vlaneseq
        %v337 = vshrl.u32 %v336, 7
        %339 = vset.pattern.permute.xlu0 %v337
        %340 = vperm.xlu0 %339, %v335
        %v341 = vpop.permute.xlu0 %340
        %v342 = vperm.slane %v297, 6
        %v343 = vlaneseq
        %v344 = vshrl.u32 %v343, 7
        %346 = vset.pattern.permute.xlu0 %v344
        %347 = vperm.xlu0 %346, %v342
        %v348 = vpop.permute.xlu0 %347
        %v349 = vperm.slane %v297, 7
        %v350 = vlaneseq
        %v351 = vshrl.u32 %v350, 7
        %353 = vset.pattern.permute.xlu0 %v351
        %354 = vperm.xlu0 %353, %v349
        %v355 = vpop.permute.xlu0 %354
        %vm356 = vcmp.eq.s32.totalorder %v299, %v306
        %vm357 = vcmp.eq.s32.totalorder %v299, %v313
        %vm358 = vcmp.eq.s32.totalorder %v299, %v320
        %vm359 = vcmp.eq.s32.totalorder %v299, %v327
        %vm360 = vcmp.eq.s32.totalorder %v299, %v334
        %vm361 = vcmp.eq.s32.totalorder %v299, %v341
        %vm362 = vcmp.eq.s32.totalorder %v299, %v348
        %vm363 = vcmp.eq.s32.totalorder %v299, %v355
        %v364 = vsel %vm356, 0.125, 0.0
        %v365 = vsel %vm357, 0.125, 0.0
        %v366 = vsel %vm358, 0.125, 0.0
        %v367 = vsel %vm359, 0.125, 0.0
        %v368 = vsel %vm360, 0.125, 0.0
        %v369 = vsel %vm361, 0.125, 0.0
        %v370 = vsel %vm362, 0.125, 0.0
        %v371 = vsel %vm363, 0.125, 0.0
        %v372 = vrot.slane %v364, 4
        %v373 = vadd.f32 %v364, %v372
        %v374 = vrot.slane %v373, 2
        %v375 = vadd.f32 %v373, %v374
        %v376 = vrot.slane %v375, 1
        %v377 = vadd.f32 %v375, %v376
        %v378 = vrot.slane %v365, 4
        %v379 = vadd.f32 %v365, %v378
        %v380 = vrot.slane %v379, 2
        %v381 = vadd.f32 %v379, %v380
        %v382 = vrot.slane %v381, 1
        %v383 = vadd.f32 %v381, %v382
        %v384 = vrot.slane %v366, 4
        %v385 = vadd.f32 %v366, %v384
        %v386 = vrot.slane %v385, 2
        %v387 = vadd.f32 %v385, %v386
        %v388 = vrot.slane %v387, 1
        %v389 = vadd.f32 %v387, %v388
        %v390 = vrot.slane %v367, 4
        %v391 = vadd.f32 %v367, %v390
        %v392 = vrot.slane %v391, 2
        %v393 = vadd.f32 %v391, %v392
        %v394 = vrot.slane %v393, 1
        %v395 = vadd.f32 %v393, %v394
        %v396 = vrot.slane %v368, 4
        %v397 = vadd.f32 %v368, %v396
        %v398 = vrot.slane %v397, 2
        %v399 = vadd.f32 %v397, %v398
        %v400 = vrot.slane %v399, 1
        %v401 = vadd.f32 %v399, %v400
        %v402 = vrot.slane %v369, 4
        %v403 = vadd.f32 %v369, %v402
        %v404 = vrot.slane %v403, 2
        %v405 = vadd.f32 %v403, %v404
        %v406 = vrot.slane %v405, 1
        %v407 = vadd.f32 %v405, %v406
        %v408 = vrot.slane %v370, 4
        %v409 = vadd.f32 %v370, %v408
        %v410 = vrot.slane %v409, 2
        %v411 = vadd.f32 %v409, %v410
        %v412 = vrot.slane %v411, 1
        %v413 = vadd.f32 %v411, %v412
        %v414 = vrot.slane %v371, 4
        %v415 = vadd.f32 %v371, %v414
        %v416 = vrot.slane %v415, 2
        %v417 = vadd.f32 %v415, %v416
        %v418 = vrot.slane %v417, 1
        %v419 = vadd.f32 %v417, %v418
        %v420 = vpack.c.bf16 %v377, %v377
        %v421 = vpack.c.bf16 %v383, %v383
        %v422 = vpack.c.bf16 %v389, %v389
        %v423 = vpack.c.bf16 %v395, %v395
        %v424 = vpack.c.bf16 %v401, %v401
        %v425 = vpack.c.bf16 %v407, %v407
        %v426 = vpack.c.bf16 %v413, %v413
        %v427 = vpack.c.bf16 %v419, %v419
        %v428 = vld [vmem:[#allocation2] sm:$0xf]
        %v429 = vld [vmem:[#allocation2 + $0x4] sm:$0xf]
        %v430 = vld [vmem:[#allocation2 + $0x8] sm:$0xf]
        %v431 = vld [vmem:[#allocation2 + $0xc] sm:$0xf]
        %v432 = vld [vmem:[#allocation2 + $0x10] sm:$0xf]
        %v433 = vld [vmem:[#allocation2 + $0x14] sm:$0xf]
        %v434 = vld [vmem:[#allocation2 + $0x18] sm:$0xf]
        %v435 = vld [vmem:[#allocation2 + $0x1c] sm:$0xf]
        %v436 = vld [vmem:[#allocation2 + $0x20] sm:$0xf]
        %v437 = vld [vmem:[#allocation2 + $0x24] sm:$0xf]
        %v438 = vld [vmem:[#allocation2 + $0x28] sm:$0xf]
        %v439 = vld [vmem:[#allocation2 + $0x2c] sm:$0xf]
        %v440 = vld [vmem:[#allocation2 + $0x30] sm:$0xf]
        %v441 = vld [vmem:[#allocation2 + $0x34] sm:$0xf]
        %v442 = vld [vmem:[#allocation2 + $0x38] sm:$0xf]
        %v443 = vld [vmem:[#allocation2 + $0x3c] sm:$0xf]
        %v452 = vunpack.c.l.b16 %v420
        %v453 = vunpack.c.l.b16 %v421
        %v454 = vunpack.c.l.b16 %v422
        %v455 = vunpack.c.l.b16 %v423
        %v456 = vunpack.c.l.b16 %v424
        %v457 = vunpack.c.l.b16 %v425
        %v458 = vunpack.c.l.b16 %v426
        %v459 = vunpack.c.l.b16 %v427
        %vm460 = vcmask 1041409
        %v461 = vsel %vm460, %v453, %v452
        %vm462 = vcmask 1042434
        %v463 = vsel %vm462, %v454, %v461
        %vm464 = vcmask 1043459
        %v465 = vsel %vm464, %v455, %v463
        %vm466 = vcmask 1044484
        %v467 = vsel %vm466, %v456, %v465
        %vm468 = vcmask 1045509
        %v469 = vsel %vm468, %v457, %v467
        %vm470 = vcmask 1046534
        %v471 = vsel %vm470, %v458, %v469
        %vm472 = vcmask 1047559
        %v473 = vsel %vm472, %v459, %v471
        %v474 = vpack.c.b16 %v473, %v473
        %v492 = vunpack.c.l.b16 %v428
        %v493 = vunpack.c.l.b16 %v429
        %v494 = vunpack.c.l.b16 %v430
        %v495 = vunpack.c.l.b16 %v431
        %v496 = vunpack.c.l.b16 %v432
        %v497 = vunpack.c.l.b16 %v433
        %v498 = vunpack.c.l.b16 %v434
        %v499 = vunpack.c.l.b16 %v435
        %v500 = vunpack.c.l.b16 %v436
        %v501 = vunpack.c.l.b16 %v437
        %v502 = vunpack.c.l.b16 %v438
        %v503 = vunpack.c.l.b16 %v439
        %v504 = vunpack.c.l.b16 %v440
        %v505 = vunpack.c.l.b16 %v441
        %v506 = vunpack.c.l.b16 %v442
        %v507 = vunpack.c.l.b16 %v443
        %v508 = vpack.c.b16 %v493, %v492
        %v509 = vpack.c.b16 %v495, %v494
        %v510 = vpack.c.b16 %v497, %v496
        %v511 = vpack.c.b16 %v499, %v498
        %v512 = vpack.c.b16 %v501, %v500
        %v513 = vpack.c.b16 %v503, %v502
        %v514 = vpack.c.b16 %v505, %v504
        %v515 = vpack.c.b16 %v507, %v506
        %524 = vmatpush.bf16.msra.mxu0 %v515
        %525 = vmatpush.bf16.msra.mxu0 %v514
        %526 = vmatpush.bf16.msra.mxu0 %v513
        %527 = vmatpush.bf16.msra.mxu0 %v512
        %528 = vmatpush.bf16.msra.mxu0 %v511
        %529 = vmatpush.bf16.msra.mxu0 %v510
        %530 = vmatpush.bf16.msra.mxu0 %v509
        %531 = vmatpush.bf16.msra.mxu0 %v508
        %532 = vmatmul.bf16.gmra.mxu0 %v474
        %v533 = vpop.f32.mrf.mxu0
        %v534 = vadd.f32 0.0, %v533
        %v535 = vpop.f32.mrf.mxu0
        %536 = vdwg.mxu0
        %v537 = vpack.c.bf16 %v534, %v534
        %v538 = vld [vmem:[#allocation5] sm:$0xf]
        %v539 = vld [vmem:[#allocation5 + $0x4] sm:$0xf]
        %v540 = vld [vmem:[#allocation5 + $0x8] sm:$0xf]
        %v541 = vld [vmem:[#allocation5 + $0xc] sm:$0xf]
        %v542 = vld [vmem:[#allocation5 + $0x10] sm:$0xf]
        %v543 = vld [vmem:[#allocation5 + $0x14] sm:$0xf]
        %v544 = vld [vmem:[#allocation5 + $0x18] sm:$0xf]
        %v545 = vld [vmem:[#allocation5 + $0x1c] sm:$0xf]
        %v546 = vld [vmem:[#allocation5 + $0x20] sm:$0xf]
        %v547 = vld [vmem:[#allocation5 + $0x24] sm:$0xf]
        %v548 = vld [vmem:[#allocation5 + $0x28] sm:$0xf]
        %v549 = vld [vmem:[#allocation5 + $0x2c] sm:$0xf]
        %v550 = vld [vmem:[#allocation5 + $0x30] sm:$0xf]
        %v551 = vld [vmem:[#allocation5 + $0x34] sm:$0xf]
        %v552 = vld [vmem:[#allocation5 + $0x38] sm:$0xf]
        %v553 = vld [vmem:[#allocation5 + $0x3c] sm:$0xf]
        %v554 = vld [vmem:[%s3] sm:$0x1]
        %v556 = vperm.slane %v554, 0
        %v574 = vunpack.c.l.b16 %v538
        %v575 = vunpack.c.l.b16 %v539
        %v576 = vunpack.c.l.b16 %v540
        %v577 = vunpack.c.l.b16 %v541
        %v578 = vunpack.c.l.b16 %v542
        %v579 = vunpack.c.l.b16 %v543
        %v580 = vunpack.c.l.b16 %v544
        %v581 = vunpack.c.l.b16 %v545
        %v582 = vunpack.c.l.b16 %v546
        %v583 = vunpack.c.l.b16 %v547
        %v584 = vunpack.c.l.b16 %v548
        %v585 = vunpack.c.l.b16 %v549
        %v586 = vunpack.c.l.b16 %v550
        %v587 = vunpack.c.l.b16 %v551
        %v588 = vunpack.c.l.b16 %v552
        %v589 = vunpack.c.l.b16 %v553
        %v590 = vpack.c.b16 %v575, %v574
        %v591 = vpack.c.b16 %v577, %v576
        %v592 = vpack.c.b16 %v579, %v578
        %v593 = vpack.c.b16 %v581, %v580
        %v594 = vpack.c.b16 %v583, %v582
        %v595 = vpack.c.b16 %v585, %v584
        %v596 = vpack.c.b16 %v587, %v586
        %v597 = vpack.c.b16 %v589, %v588
        %606 = vmatpush.bf16.msra.mxu0 %v597
        %607 = vmatpush.bf16.msra.mxu0 %v596
        %608 = vmatpush.bf16.msra.mxu0 %v595
        %609 = vmatpush.bf16.msra.mxu0 %v594
        %610 = vmatpush.bf16.msra.mxu0 %v593
        %611 = vmatpush.bf16.msra.mxu0 %v592
        %612 = vmatpush.bf16.msra.mxu0 %v591
        %613 = vmatpush.bf16.msra.mxu0 %v590
        %614 = vmatmul.bf16.gmra.mxu0 %v537
        %v615 = vpop.f32.mrf.mxu0
        %v616 = vadd.f32 %v556, %v615
        %v617 = vpop.f32.mrf.mxu0
        %618 = vdwg.mxu0
        %v619 = vtanh.pop %v616
        %v620 = vpack.c.bf16 %v619, %v619
        %v621 = vld [vmem:[#allocation7] sm:$0xf]
        %v622 = vld [vmem:[#allocation7 + $0x4] sm:$0xf]
        %v623 = vld [vmem:[#allocation7 + $0x8] sm:$0xf]
        %v624 = vld [vmem:[#allocation7 + $0xc] sm:$0xf]
        %v625 = vld [vmem:[#allocation7 + $0x10] sm:$0xf]
        %v626 = vld [vmem:[#allocation7 + $0x14] sm:$0xf]
        %v627 = vld [vmem:[#allocation7 + $0x18] sm:$0xf]
        %v628 = vld [vmem:[#allocation7 + $0x1c] sm:$0xf]
        %v629 = vld [vmem:[#allocation7 + $0x20] sm:$0xf]
        %v630 = vld [vmem:[#allocation7 + $0x24] sm:$0xf]
        %v631 = vld [vmem:[#allocation7 + $0x28] sm:$0xf]
        %v632 = vld [vmem:[#allocation7 + $0x2c] sm:$0xf]
        %v633 = vld [vmem:[#allocation7 + $0x30] sm:$0xf]
        %v634 = vld [vmem:[#allocation7 + $0x34] sm:$0xf]
        %v635 = vld [vmem:[#allocation7 + $0x38] sm:$0xf]
        %v636 = vld [vmem:[#allocation7 + $0x3c] sm:$0xf]
        %v637 = vld [vmem:[%s5] sm:$0x1]
        %v639 = vperm.slane %v637, 0
        %v657 = vunpack.c.l.b16 %v621
        %v658 = vunpack.c.l.b16 %v622
        %v659 = vunpack.c.l.b16 %v623
        %v660 = vunpack.c.l.b16 %v624
        %v661 = vunpack.c.l.b16 %v625
        %v662 = vunpack.c.l.b16 %v626
        %v663 = vunpack.c.l.b16 %v627
        %v664 = vunpack.c.l.b16 %v628
        %v665 = vunpack.c.l.b16 %v629
        %v666 = vunpack.c.l.b16 %v630
        %v667 = vunpack.c.l.b16 %v631
        %v668 = vunpack.c.l.b16 %v632
        %v669 = vunpack.c.l.b16 %v633
        %v670 = vunpack.c.l.b16 %v634
        %v671 = vunpack.c.l.b16 %v635
        %v672 = vunpack.c.l.b16 %v636
        %v673 = vpack.c.b16 %v658, %v657
        %v674 = vpack.c.b16 %v660, %v659
        %v675 = vpack.c.b16 %v662, %v661
        %v676 = vpack.c.b16 %v664, %v663
        %v677 = vpack.c.b16 %v666, %v665
        %v678 = vpack.c.b16 %v668, %v667
        %v679 = vpack.c.b16 %v670, %v669
        %v680 = vpack.c.b16 %v672, %v671
        %689 = vmatpush.bf16.msra.mxu0 %v680
        %690 = vmatpush.bf16.msra.mxu0 %v679
        %691 = vmatpush.bf16.msra.mxu0 %v678
        %692 = vmatpush.bf16.msra.mxu0 %v677
        %693 = vmatpush.bf16.msra.mxu0 %v676
        %694 = vmatpush.bf16.msra.mxu0 %v675
        %695 = vmatpush.bf16.msra.mxu0 %v674
        %696 = vmatpush.bf16.msra.mxu0 %v673
        %697 = vmatmul.bf16.gmra.mxu0 %v620
        %v698 = vpop.f32.mrf.mxu0
        %v699 = vadd.f32 %v639, %v698
        %v700 = vpop.f32.mrf.mxu0
        %701 = vdwg.mxu0
        %702 = vst [vmem:[%s292] sm:$0xff] %v699
        %s703 = sand.u32 %s161, 1
        %s704 = scalar_lea.sflag [#allocation4], %s703
        %s705 = sand.u32 %s161, 1
        %s706 = smul.addr %s705, 8
        %s707 = scalar_lea.vmem [#allocation8], %s706
        // Predicated region
        $region57: #{tpu_custom_call.1} parent=43 // pred_check
          %p708 = pneg %p171
        $region58: #{tpu_custom_call.1} parent=43 // pred_check_branch
          %710 = sbr.rel (%p708) target = $region60
        $region59: #{tpu_custom_call.1} parent=43 // pred_region
          %712 = vsyncadd %s704, 0
          %s713 = smul.addr %s22, 8
          %s714 = scalar_lea.hbm %s6, %s713
          %s716 = sshll.u32 %s707, 4
          %s717 = int_to_ptr.vmem [resolvable:$true] %s716
          %s718 = sshll.u32 %s714, 4
          %s719 = int_to_ptr.hbm [resolvable:$true] %s718
          %721 = dma.vmem_to_hbm [thread:$0]  %s717, 128, %s719, %s704
        $region60: #{tpu_custom_call.1} parent=43 // pred_fallthru
          _
      $region44: #{tpu_custom_call.1} parent=5 // pred_fallthru
        _
      %p722 = scmp.le.s32.totalorder 2, %s17
      // Predicated region
      $region61: #{tpu_custom_call.1} parent=5 // pred_check
        %p723 = pneg %p722
      $region62: #{tpu_custom_call.1} parent=5 // pred_check_branch
        %725 = sbr.rel (%p723) target = $region64
      $region63: #{tpu_custom_call.1} parent=5 // pred_region
        %s726 = ssub.s32 %s17, 2
        // Predicated region
        $region65: #{tpu_custom_call.1} parent=63 // pred_check
          %p727 = pneg %p177
        $region66: #{tpu_custom_call.1} parent=63 // pred_check_branch
          %729 = sbr.rel (%p727) target = $region68
        $region67: #{tpu_custom_call.1} parent=63 // pred_region
          %s730 = sand.u32 %s162, 1
          %s731 = scalar_lea.sflag [#allocation4], %s730
          %s732 = sand.u32 %s162, 1
          %s733 = smul.addr %s732, 8
          %s734 = scalar_lea.vmem [#allocation8], %s733
          %736 = dma.done %s731, 128
        $region68: #{tpu_custom_call.1} parent=63 // pred_fallthru
          _
      $region64: #{tpu_custom_call.1} parent=5 // pred_fallthru
        _
    $region6: #{tpu_custom_call.1} parent=1 // loop_footer
      %s21 = sadd.s32 1, %s17
    $region7: #{tpu_custom_call.1} parent=1 // loop_footer_branch
      %16 = sbr.rel target = $region3
    $region8: #{tpu_custom_call.1} parent=1 // loop_exit
      _
    %737 = vsyncpa [#allocation3], 1
    %s738 = scalar_lea.sflag [#allocation3], 1
    %739 = vsyncpa %s738, 1
    %740 = vsyncpa [#allocation6], 1
    %741 = vsyncpa [#allocation4], 1
    %s742 = scalar_lea.sflag [#allocation4], 1
    %743 = vsyncpa %s742, 1

</llo_original>
